<compile_context>
chip_gen: v7x
topology: tpu7x:2x2x1
jax: 0.10.0
libtpu: 0.0.40
codegen_flags: <defaults>
</compile_context>

<pallas_src>
import functools

import jax
import jax.numpy as jnp
from jax import lax
from jax.experimental import pallas as pl
from jax.experimental.pallas import tpu as pltpu

LANE = 128
ACC_ROWS = 512          # fixed-height f32 accumulator: (512, 128) = 256 KiB


def _round_up(a, b):
    return (a + b - 1) // b * b


def _chip_generation():
    """Best-effort TPU generation detection (5 / 6 / 7); 0 if unknown."""
    try:
        kind = jax.devices()[0].device_kind.lower()
    except Exception:
        return 0
    for g in (7, 6, 5):
        if f"v{g}" in kind:
            return g
    return 0


def _wmse_kernel(w_ref, x_ref, y_ref, o_ref, acc_ref, *,
                 block_rows, acc_rows, num_sub, blocks_per_core,
                 nblocks, tail_valid, inv_n, needs_range_check):
    c = pl.program_id(0)   # per-core (parallel) axis; size 1 on v5e/v6e
    j = pl.program_id(1)   # sequential reduction axis
    blk = c * blocks_per_core + j

    @pl.when(j == 0)
    def _init():
        acc_ref[...] = jnp.zeros_like(acc_ref)

    def _sub_sq(start):
        xs = x_ref[pl.ds(start, acc_rows), :].astype(jnp.float32)
        ys = y_ref[pl.ds(start, acc_rows), :].astype(jnp.float32)
        d = xs - ys
        return d * d

    def _accum_full():
        # Unmasked fast path: every row of this block is valid.
        if num_sub == 1:
            d = x_ref[...].astype(jnp.float32) - y_ref[...].astype(jnp.float32)
            acc_ref[...] += d * d
        else:
            def body(i, carry):
                start = pl.multiple_of(i * acc_rows, acc_rows)
                acc_ref[...] += _sub_sq(start)
                return carry
            lax.fori_loop(0, num_sub, body, None, unroll=True)

    def _accum_tail():
        # Last (partial) block only: static per-sub-slice masking. The padded
        # region of the VMEM buffer is undefined, but jnp.where selects 0.0
        # there, so garbage / NaN never propagates into the accumulator.
        for i in range(num_sub):
            lo = i * acc_rows
            hi = lo + acc_rows
            if hi <= tail_valid:                 # fully valid sub-slice
                acc_ref[...] += _sub_sq(lo)
            elif lo >= tail_valid:               # fully past the data: skip
                pass
            else:                                # partial sub-slice: mask rows
                row_ids = lax.broadcasted_iota(jnp.int32, (acc_rows, 1), 0)
                mask = row_ids < (tail_valid - lo)
                acc_ref[...] += jnp.where(mask, _sub_sq(lo), 0.0)

    def _compute():
        if tail_valid == block_rows:
            # rows divides evenly into blocks: no tail anywhere.
            _accum_full()
        else:
            is_tail = blk == (nblocks - 1)
            pl.when(blk != (nblocks - 1))(_accum_full)
            pl.when(is_tail)(_accum_tail)

    if needs_range_check:
        # Only reachable when the v7x core split doesn't divide nblocks:
        # skip the clamped duplicate block entirely (no element-wise mask).
        pl.when(blk < nblocks)(_compute)
    else:
        _compute()

    @pl.when(j == pl.num_programs(1) - 1)
    def _fini():
        o_ref[0, 0] = (jnp.sum(acc_ref[...])
                       * w_ref[0]
                       * jnp.float32(inv_n))


def wmse(x, y, w):
    assert x.shape == y.shape, "x and y must have the same shape"
    n = x.size

    w_f32 = jnp.asarray(w, dtype=jnp.float32)
    inv_n = 1.0 / float(n)

    x_f = x.reshape(-1)
    y_f = y.reshape(-1)

    # Handle the <128-element flat tail in plain JAX instead of jnp.pad
    # (pad would materialize full HBM copies of both inputs).
    n_main = (n // LANE) * LANE
    tail_n = n - n_main
    if tail_n:
        dt = x_f[n_main:].astype(jnp.float32) - y_f[n_main:].astype(jnp.float32)
        tail_sum = jnp.sum(dt * dt)
    else:
        tail_sum = None

    if n_main == 0:
        # Entire input is smaller than one lane row; pure-JAX path.
        return tail_sum * w_f32 * jnp.float32(inv_n)

    if tail_n:
        x_main, y_main = x_f[:n_main], y_f[:n_main]
    else:
        x_main, y_main = x_f, y_f
    rows = n_main // LANE
    x2 = x_main.reshape(rows, LANE)
    y2 = y_main.reshape(rows, LANE)

    # Generation-aware tiling / core split / pipeline depth.
    gen = _chip_generation()
    if gen >= 7:
        max_block_rows, ncores_max, nbuf = 8192, 2, 3
    elif gen == 6:
        max_block_rows, ncores_max, nbuf = 4096, 1, 2
    else:  # v5e and unknown chips: stay within the 16 MiB scoped-VMEM default
        max_block_rows, ncores_max, nbuf = 2048, 1, 2

    # Sublane packing granule: 8 rows/vreg for 32-bit, 16 for bf16, 32 for 8-bit.
    itemsize = min(x.dtype.itemsize, y.dtype.itemsize)
    row_granule = {4: 8, 2: 16}.get(itemsize, 32)

    r_g = _round_up(rows, row_granule)
    if r_g <= ACC_ROWS:
        block_rows = r_g                                  # single small block
    else:
        block_rows = min(max_block_rows, _round_up(rows, ACC_ROWS))
    acc_rows = min(block_rows, ACC_ROWS)
    num_sub = block_rows // acc_rows                      # exact by construction

    nblocks = pl.cdiv(rows, block_rows)
    ncores = min(ncores_max, nblocks)
    blocks_per_core = pl.cdiv(nblocks, ncores)
    needs_range_check = (ncores * blocks_per_core) != nblocks
    tail_valid = rows - (nblocks - 1) * block_rows        # static Python int

    if needs_range_check:
        def block_map(c, j):
            # Clamp so a fully-skipped out-of-range step never issues OOB DMA.
            return (jnp.minimum(c * blocks_per_core + j, nblocks - 1), 0)
    else:
        def block_map(c, j):
            return (c * blocks_per_core + j, 0)

    if nbuf != 2:
        data_spec = pl.BlockSpec((block_rows, LANE), block_map,
                                 pipeline_mode=pl.Buffered(nbuf))
    else:
        data_spec = pl.BlockSpec((block_rows, LANE), block_map)

    kernel = functools.partial(
        _wmse_kernel,
        block_rows=block_rows,
        acc_rows=acc_rows,
        num_sub=num_sub,
        blocks_per_core=blocks_per_core,
        nblocks=nblocks,
        tail_valid=tail_valid,
        inv_n=inv_n,
        needs_range_check=needs_range_check,
    )

    w_arr = w_f32.reshape(1)

    # TODO(synk): on v7x, confirm via xprof that the leading "parallel" axis
    # actually shards across both TensorCores; if not, switch it to
    # pltpu.CORE_PARALLEL.
    partials = pl.pallas_call(
        kernel,
        out_shape=jax.ShapeDtypeStruct((ncores, 1), jnp.float32),
        grid_spec=pltpu.PrefetchScalarGridSpec(
            num_scalar_prefetch=0,
            grid=(ncores, blocks_per_core),
            in_specs=[
                pl.BlockSpec(memory_space=pltpu.SMEM),   # w (scalar)
                data_spec,                               # x
                data_spec,                               # y
            ],
            out_specs=pl.BlockSpec((1, 1), lambda c, j: (c, 0),
                                   memory_space=pltpu.SMEM),
            scratch_shapes=[pltpu.VMEM((acc_rows, LANE), jnp.float32)],
        ),
        compiler_params=pltpu.CompilerParams(
            dimension_semantics=("parallel", "arbitrary"),
        ),
    )(w_arr, x2, y2)

    result = jnp.sum(partials)          # per-core partials, already * w / N
    if tail_n:
        result = result + tail_sum * w_f32 * jnp.float32(inv_n)
    return result


if __name__ == "__main__":
    # WMSE "parameter": scalar weight w (deterministic in-script init)
    W = 0.5

    key = jax.random.PRNGKey(0)
    kx, ky = jax.random.split(key)
    x = jax.random.normal(kx, (2, 4, 16, 16), dtype=jnp.float32)
    y = jax.random.normal(ky, (2, 4, 16, 16), dtype=jnp.float32)

    loss = wmse(x, y, W)
    jax.block_until_ready(loss)

    # pure-JAX reference check
    ref = jnp.mean((x - y) ** 2 * W)
    assert jnp.allclose(loss, ref, rtol=1e-5, atol=1e-6), (loss, ref)

    print("KERNEL_OK")
</pallas_src>

<mosaic_0001>
module attributes {stable_mosaic.version = 11 : i64} {
  func.func @_wmse_kernel(%arg0: i32, %arg1: i32, %arg2: memref<1xf32, #tpu.memory_space<smem>>, %arg3: memref<16x128xf32, #tpu.memory_space<vmem>>, %arg4: memref<16x128xf32, #tpu.memory_space<vmem>>, %arg5: memref<1x1xf32, #tpu.memory_space<smem>>, %arg6: memref<16x128xf32, #tpu.memory_space<vmem>>) attributes {dimension_semantics = [#tpu.dimension_semantics<parallel>, #tpu.dimension_semantics<arbitrary>], iteration_bounds = array<i64: 1, 1>, scalar_prefetch = 0 : i64, scratch_operands = 1 : i64, tpu.core_type = #tpu.core_type<tc>, window_params = [{transform_indices = @transform_0, window_bounds = array<i64: 1>}, {transform_indices = @transform_1, window_bounds = array<i64: 16, 128>}, {transform_indices = @transform_2, window_bounds = array<i64: 16, 128>}, {transform_indices = @transform_3, window_bounds = array<i64: 1, 1>}]} {
    %c0_i32 = arith.constant 0 : i32
    %0 = arith.cmpi eq, %arg1, %c0_i32 : i32
    %1 = arith.extui %0 : i1 to i32
    %c0_i32_0 = arith.constant 0 : i32
    %2 = arith.cmpi ne, %1, %c0_i32_0 : i32
    scf.if %2 {
      %cst = arith.constant 0.000000e+00 : f32
      %13 = vector.broadcast %cst : f32 to vector<16x128xf32>
      %c0_10 = arith.constant 0 : index
      %c0_11 = arith.constant 0 : index
      %14 = vector.load %arg6[%c0_10, %c0_11] : memref<16x128xf32, #tpu.memory_space<vmem>>, vector<16x128xf32>
      tpu.vector_store %arg6[%c0_10, %c0_11], %13 {strides = array<i32>} : memref<16x128xf32, #tpu.memory_space<vmem>>, vector<16x128xf32>,
    } else {
    }
    %c0 = arith.constant 0 : index
    %c0_1 = arith.constant 0 : index
    %3 = vector.load %arg3[%c0, %c0_1] : memref<16x128xf32, #tpu.memory_space<vmem>>, vector<16x128xf32>
    %c0_2 = arith.constant 0 : index
    %c0_3 = arith.constant 0 : index
    %4 = vector.load %arg4[%c0_2, %c0_3] : memref<16x128xf32, #tpu.memory_space<vmem>>, vector<16x128xf32>
    %5 = arith.subf %3, %4 : vector<16x128xf32>
    %c0_4 = arith.constant 0 : index
    %c0_5 = arith.constant 0 : index
    %6 = vector.load %arg6[%c0_4, %c0_5] : memref<16x128xf32, #tpu.memory_space<vmem>>, vector<16x128xf32>
    %7 = arith.mulf %5, %5 : vector<16x128xf32>
    %8 = arith.addf %6, %7 : vector<16x128xf32>
    %c0_6 = arith.constant 0 : index
    %c0_7 = arith.constant 0 : index
    %9 = vector.load %arg6[%c0_6, %c0_7] : memref<16x128xf32, #tpu.memory_space<vmem>>, vector<16x128xf32>
    tpu.vector_store %arg6[%c0_6, %c0_7], %8 {strides = array<i32>} : memref<16x128xf32, #tpu.memory_space<vmem>>, vector<16x128xf32>,
    %c0_i32_8 = arith.constant 0 : i32
    %10 = arith.cmpi eq, %arg1, %c0_i32_8 : i32
    %11 = arith.extui %10 : i1 to i32
    %c0_i32_9 = arith.constant 0 : i32
    %12 = arith.cmpi ne, %11, %c0_i32_9 : i32
    scf.if %12 {
      %c0_10 = arith.constant 0 : index
      %c0_11 = arith.constant 0 : index
      %13 = vector.load %arg6[%c0_10, %c0_11] : memref<16x128xf32, #tpu.memory_space<vmem>>, vector<16x128xf32>
      %14 = vector.shape_cast %13 : vector<16x128xf32> to vector<1x16x128xf32>
      %cst = arith.constant dense<0.000000e+00> : vector<1xf32>
      %15 = vector.multi_reduction <add>, %14, %cst [1, 2] : vector<1x16x128xf32> to vector<1xf32>
      %16 = vector.shape_cast %15 : vector<1xf32> to vector<1x1x1xf32>
      %17 = vector.extract %16[0, 0, 0] : f32 from vector<1x1x1xf32>
      %c0_12 = arith.constant 0 : index
      %18 = memref.load %arg2[%c0_12] : memref<1xf32, #tpu.memory_space<smem>>
      %19 = arith.mulf %17, %18 : f32
      %cst_13 = arith.constant 4.8828125E-4 : f32
      %20 = arith.mulf %19, %cst_13 : f32
      %c0_14 = arith.constant 0 : index
      %c0_15 = arith.constant 0 : index
      %21 = memref.load %arg5[%c0_14, %c0_15] : memref<1x1xf32, #tpu.memory_space<smem>>
      memref.store %20, %arg5[%c0_14, %c0_15] : memref<1x1xf32, #tpu.memory_space<smem>>
    } else {
    }
    return
  }
  func.func @transform_0(%arg0: i32, %arg1: i32) -> i32 {
    %c0_i32 = arith.constant 0 : i32
    %c0_i32_0 = arith.constant 0 : i32
    return %c0_i32 : i32
  }
  func.func @transform_1(%arg0: i32, %arg1: i32) -> (i32, i32) {
    %c1_i32 = arith.constant 1 : i32
    %0 = arith.muli %arg0, %c1_i32 : i32
    %1 = arith.addi %0, %arg1 : i32
    %c0_i32 = arith.constant 0 : i32
    %c0_i32_0 = arith.constant 0 : i32
    return %1, %c0_i32 : i32, i32
  }
  func.func @transform_2(%arg0: i32, %arg1: i32) -> (i32, i32) {
    %c1_i32 = arith.constant 1 : i32
    %0 = arith.muli %arg0, %c1_i32 : i32
    %1 = arith.addi %0, %arg1 : i32
    %c0_i32 = arith.constant 0 : i32
    %c0_i32_0 = arith.constant 0 : i32
    return %1, %c0_i32 : i32, i32
  }
  func.func @transform_3(%arg0: i32, %arg1: i32) -> (i32, i32) {
    %c0_i32 = arith.constant 0 : i32
    %c0_i32_0 = arith.constant 0 : i32
    return %arg0, %c0_i32 : i32, i32
  }
}

</mosaic_0001>

<llo_original>
// kernel: tpu_custom_call.1
$region0: #{tpu_custom_call.1}
  #allocation0 [shape = 'u32[]', space=smem, size = 0x4, offset = 0x4, fixed_abs, tag = 'smem constant byte address 0x4 - core index']
  #allocation1 [shape = 'u32[144,128]{1,0:T(1,128)}', space=vmem, size = 0x12000, scoped, tag = 'internal scratch']
  #allocation2 [shape = 'f32[16,128]{1,0:T(8,128)}', space=vmem, size = 0x2000, scoped, tag = 'scratch operand']
  #allocation3 [shape = 'f32[1]{0:T(128)S(6)}', space=smem, size = 0x200, scoped, tag = 'scoped memory for tpu_custom_call.1']
  %s0 = inlined_call_operand.<no memory space> [shape: f32[1], index: 0, kind: input, shape index: {}]
  %s1 = inlined_call_operand.hbm [shape: f32[16,128], index: 1, kind: input, shape index: {}]
  %s2 = inlined_call_operand.hbm [shape: f32[16,128], index: 2, kind: input, shape index: {}]
  %s3 = inlined_call_operand.hbm [shape: f32[1,1], index: 3, kind: output, shape index: {}]
  %s4 = sld [smem:[#allocation0]]
  $region38: #{tpu_custom_call.1} parent=0
    _
  %s6 = ssub.s32 1, %s4
  %s7 = scalar_select 0, %s6, %s4
  %8 = sst [smem:[#allocation3]] %s0
  $region1: #{tpu_custom_call.1} parent=0
    #allocation4 [shape = 'u8[8192]{0}', space=vmem, size = 0x2000, scoped, tag = 'input window, operand 1, single buffered']
    #allocation5 [shape = 's32[1]{0}', space=sflag, size = 0x4, scoped, tag = 'scoped memory for tpu_custom_call.1']
    #allocation6 [shape = 's32[1]{0}', space=sflag, size = 0x4, scoped, tag = 'scoped memory for tpu_custom_call.1']
    #allocation7 [shape = 'u8[8192]{0}', space=vmem, size = 0x2000, scoped, tag = 'input window, operand 2, single buffered']
    #allocation8 [shape = 's32[1]{0}', space=sflag, size = 0x4, scoped, tag = 'scoped memory for tpu_custom_call.1']
    #allocation9 [shape = 'u8[512]{0}', space=smem, size = 0x200, scoped, tag = 'output window, operand 0, single buffered']
    %9 = vsyncpa [#allocation5], 0
    %10 = vsyncpa [#allocation8], 0
    %11 = vsyncpa [#allocation6], 0
    // Predicated region
    $region2: #{tpu_custom_call.1} parent=1 // pred_check
      _
    $region3: #{tpu_custom_call.1} parent=1 // pred_check_branch
      %13 = sbr.rel (0) target = $region5
    $region4: #{tpu_custom_call.1} parent=1 // pred_region
      _
    $region5: #{tpu_custom_call.1} parent=1 // pred_fallthru
      _
    // Predicated region
    $region6: #{tpu_custom_call.1} parent=1 // pred_check
      _
    $region7: #{tpu_custom_call.1} parent=1 // pred_check_branch
      %15 = sbr.rel (0) target = $region9
    $region8: #{tpu_custom_call.1} parent=1 // pred_region
      %s16 = sadd.s32 0, 0
      %s17 = smul.u32 2, %s16
      %s19 = ssub.s32 256, 256
      %20 = vsyncadd [#allocation5], %s19
      %s21 = smul.addr %s17, 128
      %s22 = scalar_lea.hbm %s1, %s21
      %s23 = sshll.u32 [#allocation4], 4
      %s24 = int_to_ptr.vmem [resolvable:$true] %s23
      %29 = dma.hbm_to_vmem [thread:$0]  %s22, 256, %s24, [#allocation5], 128, 128, 8
    $region9: #{tpu_custom_call.1} parent=1 // pred_fallthru
      _
    // Predicated region
    $region10: #{tpu_custom_call.1} parent=1 // pred_check
      _
    $region11: #{tpu_custom_call.1} parent=1 // pred_check_branch
      %31 = sbr.rel (0) target = $region13
    $region12: #{tpu_custom_call.1} parent=1 // pred_region
      %s32 = sadd.s32 0, 0
      %s33 = smul.u32 2, %s32
      %s35 = ssub.s32 256, 256
      %36 = vsyncadd [#allocation8], %s35
      %s37 = smul.addr %s33, 128
      %s38 = scalar_lea.hbm %s2, %s37
      %s39 = sshll.u32 [#allocation7], 4
      %s40 = int_to_ptr.vmem [resolvable:$true] %s39
      %45 = dma.hbm_to_vmem [thread:$0]  %s38, 256, %s40, [#allocation8], 128, 128, 8
    $region13: #{tpu_custom_call.1} parent=1 // pred_fallthru
      _
    // Predicated region
    $region14: #{tpu_custom_call.1} parent=1 // pred_check
      _
    $region15: #{tpu_custom_call.1} parent=1 // pred_check_branch
      %47 = sbr.rel (0) target = $region17
    $region16: #{tpu_custom_call.1} parent=1 // pred_region
      %48 = dma.done [#allocation5], 256
    $region17: #{tpu_custom_call.1} parent=1 // pred_fallthru
      _
    // Predicated region
    $region18: #{tpu_custom_call.1} parent=1 // pred_check
      _
    $region19: #{tpu_custom_call.1} parent=1 // pred_check_branch
      %50 = sbr.rel (0) target = $region21
    $region20: #{tpu_custom_call.1} parent=1 // pred_region
      %51 = dma.done [#allocation8], 256
    $region21: #{tpu_custom_call.1} parent=1 // pred_fallthru
      _
    %s52 = sadd.s32 0, 0
    %s53 = smul.u32 2, %s52
    %s54 = sadd.s32 0, 0
    %s55 = smul.u32 2, %s54
    %p56 = scmp.eq.s32.totalorder 0, 0
    // Predicated region
    $region22: #{tpu_custom_call.1} parent=1 // pred_check
      %p57 = pneg %p56
    $region23: #{tpu_custom_call.1} parent=1 // pred_check_branch
      %59 = sbr.rel (%p57) target = $region25
    $region24: #{tpu_custom_call.1} parent=1 // pred_region
      %60 = vst [vmem:[#allocation2] sm:$0xff] 0.0
      %61 = vst [vmem:[#allocation2 + $0x8] sm:$0xff] 0.0
    $region25: #{tpu_custom_call.1} parent=1 // pred_fallthru
      _
    %v62 = vld [vmem:[#allocation4] sm:$0xff]
    %v63 = vld [vmem:[#allocation4 + $0x8] sm:$0xff]
    %v64 = vld [vmem:[#allocation7] sm:$0xff]
    %v65 = vld [vmem:[#allocation7 + $0x8] sm:$0xff]
    %v66 = vsub.f32 %v62, %v64
    %v67 = vsub.f32 %v63, %v65
    %v68 = vld [vmem:[#allocation2] sm:$0xff]
    %v69 = vld [vmem:[#allocation2 + $0x8] sm:$0xff]
    %v70 = vmul.f32 %v66, %v66
    %v71 = vmul.f32 %v67, %v67
    %v72 = vadd.f32 %v68, %v70
    %v73 = vadd.f32 %v69, %v71
    %74 = vst [vmem:[#allocation2] sm:$0xff] %v72
    %75 = vst [vmem:[#allocation2 + $0x8] sm:$0xff] %v73
    // Predicated region
    $region26: #{tpu_custom_call.1} parent=1 // pred_check
      %p76 = pneg %p56
    $region27: #{tpu_custom_call.1} parent=1 // pred_check_branch
      %78 = sbr.rel (%p76) target = $region29
    $region28: #{tpu_custom_call.1} parent=1 // pred_region
      %v79 = vld [vmem:[#allocation2] sm:$0xff]
      %v80 = vld [vmem:[#allocation2 + $0x8] sm:$0xff]
      %v81 = vadd.f32 %v79, %v80
      %82 = vadd.xlane.f32.xlu0 %v81
      %v83 = vpop.xlane.xlu0 %82
      %v84 = vrot.slane %v83, 4
      %v85 = vadd.f32 %v83, %v84
      %v86 = vrot.slane %v85, 2
      %v87 = vadd.f32 %v85, %v86
      %v88 = vrot.slane %v87, 1
      %v89 = vadd.f32 %v87, %v88
      %s90 = vtos %v89
      %s91 = sld [smem:[#allocation3]]
      %s92 = smul.f32 %s90, %s91
      %s93 = smul.f32 %s92, 0.00048828125
      %s94 = scalar_lea.smem [#allocation9], 0
      %95 = sst [smem:[%s94]] %s93
    $region29: #{tpu_custom_call.1} parent=1 // pred_fallthru
      _
    // Predicated region
    $region30: #{tpu_custom_call.1} parent=1 // pred_check
      _
    $region31: #{tpu_custom_call.1} parent=1 // pred_check_branch
      %97 = sbr.rel (0) target = $region33
    $region32: #{tpu_custom_call.1} parent=1 // pred_region
      %s99 = ssub.s32 16, 16
      %100 = vsyncadd [#allocation6], %s99
      %103 = dma.smem_to_hbm [#allocation9], 16, %s3, [#allocation6]
    $region33: #{tpu_custom_call.1} parent=1 // pred_fallthru
      _
    // Predicated region
    $region34: #{tpu_custom_call.1} parent=1 // pred_check
      _
    $region35: #{tpu_custom_call.1} parent=1 // pred_check_branch
      %105 = sbr.rel (0) target = $region37
    $region36: #{tpu_custom_call.1} parent=1 // pred_region
      %106 = dma.done [#allocation6], 16
    $region37: #{tpu_custom_call.1} parent=1 // pred_fallthru
      _
    %107 = sfence
    %108 = vsyncpa [#allocation5], 1
    %109 = vsyncpa [#allocation8], 1
    %110 = vsyncpa [#allocation6], 1

</llo_original>
